<compile_context>
chip_gen: v5e
topology: v5e:2x2
jax: 0.10.0
libtpu: 0.0.40
codegen_flags: <defaults>
</compile_context>

<pallas_src>
import functools
import math

import jax
import jax.numpy as jnp
from jax import lax
from jax.experimental import pallas as pl
from jax.experimental.pallas import tpu as pltpu

NORM_EPS = 1e-12  # F.normalize default: x / max(||x||_2, 1e-12)

# Double-buffered pipeline working-set budget (bytes).  Chosen so the tiles fit
# comfortably in v7x's 64 MiB VMEM; v5e/v6e (128 MiB) have extra headroom.
_VMEM_BUDGET_BYTES = 36 * 1024 * 1024
_VMEM_LIMIT_BYTES = 48 * 1024 * 1024


def _round_up(x, n):
    return ((x + n - 1) // n) * n


def _arcface_kernel(x_ref, w_ref, inv_x_ref, inv_w_ref, label_ref, o_ref, *,
                    s, eps, cos_m, sin_m, cos_threshold):
    tb, tn = o_ref.shape

    # MXU: (tb, K) x (K, tn), bf16 (or f32) operands, f32 accumulation.
    raw = jnp.dot(x_ref[...], w_ref[...],
                  preferred_element_type=jnp.float32)            # (tb, tn) f32

    # Fold the precomputed f32 inverse row norms in after the matmul.
    cos_theta = raw * inv_x_ref[...] * inv_w_ref[...]
    cos_c = jnp.clip(cos_theta, -1.0 + eps, 1.0 - eps)

    label = label_ref[...]                                        # (tb, 1) int32
    col0 = pl.program_id(0) * tn                                  # global class offset
    has_label = jnp.any(jnp.logical_and(label >= col0, label < col0 + tn))

    # Full margin epilogue only for class tiles that actually contain a label.
    @pl.when(has_label)
    def _():
        # one_hot.scatter_(1, label, 1) -> compare against GLOBAL column index.
        col_ids = col0 + lax.broadcasted_iota(jnp.int32, (tb, tn), 1)
        one_hot = col_ids == label                                # (tb, tn) bool
        # selected = where(theta > pi - m, 0, one_hot)
        #          = one_hot & (cos_theta >= cos(pi - m))   (acos is monotone)
        selected = jnp.logical_and(one_hot, cos_c >= cos_threshold)
        # cos(theta + m) = cos*cos(m) - sin*sin(m), sin = sqrt(1-cos^2), theta in [0, pi]
        sin_c = jnp.sqrt(jnp.maximum(1.0 - cos_c * cos_c, 0.0))
        cos_margin = cos_c * cos_m - sin_c * sin_m
        o_ref[...] = (jnp.where(selected, cos_margin, cos_c) * s).astype(o_ref.dtype)

    @pl.when(jnp.logical_not(has_label))
    def _():
        o_ref[...] = (cos_c * s).astype(o_ref.dtype)


def arcface_forward(x, weight, label, *, s=64.0, m=0.5, eps=1e-6,
                    block_b=512, block_n=2048,
                    operand_dtype=jnp.bfloat16):
    """ArcFace forward. x: (B, D) f32, weight: (N, D) f32, label: (B,) int -> (B, N) f32."""
    B, D = x.shape
    N, D_w = weight.shape
    assert D == D_w, "in_features mismatch between x and weight"

    x = x.astype(jnp.float32)
    weight = weight.astype(jnp.float32)

    # Inverse row L2 norms, computed once in f32 from the ORIGINAL f32 tensors
    # (never from the bf16 streams), hoisted out of the kernel.
    inv_x = lax.rsqrt(jnp.maximum(jnp.sum(x * x, axis=1, keepdims=True),
                                  NORM_EPS * NORM_EPS))                 # (B, 1)
    inv_w = lax.rsqrt(jnp.maximum(jnp.sum(weight * weight, axis=1),
                                  NORM_EPS * NORM_EPS)).reshape(1, N)   # (1, N)

    op_bytes = jnp.dtype(operand_dtype).itemsize

    # Tile sizes aligned to the (8, 128) vreg grid, clamped to array extents,
    # then shrunk (N first, then B) until the double-buffered working set fits
    # the VMEM budget (v7x has only 64 MiB of VMEM).
    tb = min(_round_up(block_b, 8), _round_up(B, 8))
    tn = min(_round_up(block_n, 128), _round_up(N, 128))
    d_pad = _round_up(D, 128)  # pad the contraction dim for MXU alignment

    def working_set(tb_, tn_):
        return 2 * (tb_ * d_pad * op_bytes       # x tile
                    + d_pad * tn_ * op_bytes     # weight tile
                    + tb_ * tn_ * 4              # output tile (f32)
                    + tb_ * 4 + tn_ * 4 + tb_ * 4)  # inv_x, inv_w, label

    while working_set(tb, tn) > _VMEM_BUDGET_BYTES and (tn > 128 or tb > 8):
        if tn > 128:
            tn = max(128, _round_up(tn // 2, 128))
        else:
            tb = max(8, _round_up(tb // 2, 8))

    b_pad = _round_up(B, tb)
    n_pad = _round_up(N, tn)

    # bf16 (or f32) HBM streams; weight pre-transposed to (D, N) so the MXU
    # consumes a canonical (M,K)x(K,N) layout with no in-kernel relayout.
    x_op = jnp.pad(x.astype(operand_dtype), ((0, b_pad - B), (0, d_pad - D)))
    w_op = jnp.pad(weight.astype(operand_dtype).T,
                   ((0, d_pad - D), (0, n_pad - N)))
    inv_x_p = jnp.pad(inv_x, ((0, b_pad - B), (0, 0)))
    inv_w_p = jnp.pad(inv_w, ((0, 0), (0, n_pad - N)))
    label2d = jnp.pad(label.astype(jnp.int32).reshape(B, 1),
                      ((0, b_pad - B), (0, 0)))

    kernel = functools.partial(
        _arcface_kernel,
        s=s, eps=eps,
        cos_m=math.cos(m), sin_m=math.sin(m),
        cos_threshold=math.cos(math.pi - m))

    # Grid axis 0 = N (class) tiles, axis 1 = B tiles (inner, fastest): the
    # weight tile's block index ignores the inner axis, so each (D, tn) W slab
    # is DMA'd once and reused across all B tiles.  With the default block_b,
    # typical batches collapse to a single B tile, so x/label/inv_x are DMA'd
    # once and stay VMEM-resident for the whole grid.
    out = pl.pallas_call(
        kernel,
        out_shape=jax.ShapeDtypeStruct((b_pad, n_pad), jnp.float32),
        grid=(n_pad // tn, b_pad // tb),
        in_specs=[
            pl.BlockSpec((tb, d_pad), lambda j, i: (i, 0)),   # x
            pl.BlockSpec((d_pad, tn), lambda j, i: (0, j)),   # weight^T (reused over i)
            pl.BlockSpec((tb, 1), lambda j, i: (i, 0)),       # inv_x
            pl.BlockSpec((1, tn), lambda j, i: (0, j)),       # inv_w
            pl.BlockSpec((tb, 1), lambda j, i: (i, 0)),       # label
        ],
        out_specs=pl.BlockSpec((tb, tn), lambda j, i: (i, j)),
        compiler_params=pltpu.CompilerParams(
            # Megacore (v7x) shards the class axis -> the (N, D) weight stream
            # is read from HBM once total, not once per TensorCore.
            dimension_semantics=("parallel", "arbitrary"),
            vmem_limit_bytes=_VMEM_LIMIT_BYTES),
    )(x_op, w_op, inv_x_p, inv_w_p, label2d)

    return out[:B, :N]


def arcface_reference(x, weight, label, s=64.0, m=0.5, eps=1e-6):
    """Pure-JAX port of the PyTorch forward (f32 throughout)."""
    xn = x / jnp.maximum(jnp.linalg.norm(x, axis=1, keepdims=True), NORM_EPS)
    wn = weight / jnp.maximum(jnp.linalg.norm(weight, axis=1, keepdims=True), NORM_EPS)
    cos = jnp.clip(jnp.dot(xn, wn.T, precision=jax.lax.Precision.HIGHEST),
                   -1.0 + eps, 1.0 - eps)
    theta = jnp.arccos(cos)
    one_hot = jax.nn.one_hot(label, weight.shape[0], dtype=jnp.float32)
    selected = jnp.where(theta > math.pi - m,
                         jnp.zeros_like(one_hot), one_hot).astype(bool)
    return jnp.cos(jnp.where(selected, theta + m, theta)) * s


if __name__ == "__main__":
    # Small deterministic example consistent with the module interface.
    B, IN_FEATURES, OUT_FEATURES = 16, 128, 256

    key = jax.random.PRNGKey(0)
    k_x, k_w, k_lbl = jax.random.split(key, 3)

    x = jax.random.normal(k_x, (B, IN_FEATURES), dtype=jnp.float32)

    # xavier_uniform_ on weight of shape (out_features, in_features)
    bound = math.sqrt(6.0 / (IN_FEATURES + OUT_FEATURES))
    weight = jax.random.uniform(
        k_w, (OUT_FEATURES, IN_FEATURES), dtype=jnp.float32,
        minval=-bound, maxval=bound)

    label = jax.random.randint(k_lbl, (B,), 0, OUT_FEATURES, dtype=jnp.int32)

    ref = arcface_reference(x, weight, label)

    # 1) Default (large-tile) config: collapses to a 1x1 grid with x resident.
    out = arcface_forward(x, weight, label)
    jax.block_until_ready(out)
    assert out.shape == (B, OUT_FEATURES) and out.dtype == jnp.float32
    assert bool(jnp.all(jnp.isfinite(out)))
    err = float(jnp.max(jnp.abs(out - ref)))
    assert err < 0.5, f"bf16-operand path: max abs err vs reference too large: {err}"

    # 2) Small tiles: exercises a real 2-D grid (2 N-tiles x 2 B-tiles), the
    #    global one-hot indexing, W-slab reuse and the pl.when epilogue gate.
    out_tiled = arcface_forward(x, weight, label, block_b=8, block_n=128)
    jax.block_until_ready(out_tiled)
    err_tiled = float(jnp.max(jnp.abs(out_tiled - ref)))
    assert err_tiled < 0.5, f"tiled bf16 path: max abs err too large: {err_tiled}"

    # 3) f32-operand path (training-parity precision): tight tolerance.
    out_f32 = arcface_forward(x, weight, label, block_b=8, block_n=128,
                              operand_dtype=jnp.float32)
    jax.block_until_ready(out_f32)
    err_f32 = float(jnp.max(jnp.abs(out_f32 - ref)))
    assert err_f32 < 2e-2, f"f32 path: max abs err too large: {err_f32}"

    print("KERNEL_OK")
</pallas_src>

<mosaic_0001>
module attributes {stable_mosaic.version = 11 : i64} {
  func.func @_arcface_kernel(%arg0: i32, %arg1: i32, %arg2: memref<16x128xbf16, #tpu.memory_space<vmem>>, %arg3: memref<128x256xbf16, #tpu.memory_space<vmem>>, %arg4: memref<16x1xf32, #tpu.memory_space<vmem>>, %arg5: memref<1x256xf32, #tpu.memory_space<vmem>>, %arg6: memref<16x1xi32, #tpu.memory_space<vmem>>, %arg7: memref<16x256xf32, #tpu.memory_space<vmem>>) attributes {dimension_semantics = [#tpu.dimension_semantics<parallel>, #tpu.dimension_semantics<arbitrary>], iteration_bounds = array<i64: 1, 1>, scalar_prefetch = 0 : i64, scratch_operands = 0 : i64, tpu.core_type = #tpu.core_type<tc>, window_params = [{transform_indices = @transform_0, window_bounds = array<i64: 16, 128>}, {transform_indices = @transform_1, window_bounds = array<i64: 128, 256>}, {transform_indices = @transform_2, window_bounds = array<i64: 16, 1>}, {transform_indices = @transform_3, window_bounds = array<i64: 1, 256>}, {transform_indices = @transform_4, window_bounds = array<i64: 16, 1>}, {transform_indices = @transform_5, window_bounds = array<i64: 16, 256>}]} {
    %c0 = arith.constant 0 : index
    %c0_0 = arith.constant 0 : index
    %0 = vector.load %arg2[%c0, %c0_0] : memref<16x128xbf16, #tpu.memory_space<vmem>>, vector<16x128xbf16>
    %c0_1 = arith.constant 0 : index
    %c0_2 = arith.constant 0 : index
    %1 = vector.load %arg3[%c0_1, %c0_2] : memref<128x256xbf16, #tpu.memory_space<vmem>>, vector<128x256xbf16>
    %cst = arith.constant dense<0.000000e+00> : vector<16x256xf32>
    %2 = tpu.matmul %0, %1, %cst {dimension_numbers = #tpu.dot_dimension_numbers<[1], [0], [0], [1], [0, 0, 1, 1], [], []>} : vector<16x128xbf16>, vector<128x256xbf16>, vector<16x256xf32> -> vector<16x256xf32>
    %c0_3 = arith.constant 0 : index
    %c0_4 = arith.constant 0 : index
    %3 = vector.load %arg4[%c0_3, %c0_4] : memref<16x1xf32, #tpu.memory_space<vmem>>, vector<16x1xf32>
    %4 = vector.broadcast %3 : vector<16x1xf32> to vector<16x256xf32>
    %5 = arith.mulf %2, %4 : vector<16x256xf32>
    %c0_5 = arith.constant 0 : index
    %c0_6 = arith.constant 0 : index
    %6 = vector.load %arg5[%c0_5, %c0_6] : memref<1x256xf32, #tpu.memory_space<vmem>>, vector<1x256xf32>
    %7 = vector.broadcast %6 : vector<1x256xf32> to vector<16x256xf32>
    %8 = arith.mulf %5, %7 : vector<16x256xf32>
    %cst_7 = arith.constant -0.999998986 : f32
    %cst_8 = arith.constant 0.999998986 : f32
    %9 = vector.broadcast %cst_7 : f32 to vector<16x256xf32>
    %10 = arith.maximumf %9, %8 : vector<16x256xf32>
    %11 = vector.broadcast %cst_8 : f32 to vector<16x256xf32>
    %12 = arith.minimumf %11, %10 : vector<16x256xf32>
    %c0_9 = arith.constant 0 : index
    %c0_10 = arith.constant 0 : index
    %13 = vector.load %arg6[%c0_9, %c0_10] : memref<16x1xi32, #tpu.memory_space<vmem>>, vector<16x1xi32>
    %c256_i32 = arith.constant 256 : i32
    %14 = arith.muli %arg0, %c256_i32 : i32
    %15 = vector.broadcast %14 : i32 to vector<16x1xi32>
    %16 = arith.cmpi sge, %13, %15 : vector<16x1xi32>
    %c256_i32_11 = arith.constant 256 : i32
    %17 = arith.addi %14, %c256_i32_11 : i32
    %18 = vector.broadcast %17 : i32 to vector<16x1xi32>
    %19 = arith.cmpi slt, %13, %18 : vector<16x1xi32>
    %20 = arith.andi %16, %19 : vector<16x1xi1>
    %cst_12 = arith.constant 1.000000e+00 : f32
    %cst_13 = arith.constant 0.000000e+00 : f32
    %21 = vector.broadcast %cst_12 : f32 to vector<16x1xf32>
    %22 = vector.broadcast %cst_13 : f32 to vector<16x1xf32>
    %23 = arith.select %20, %21, %22 : vector<16x1xi1>, vector<16x1xf32>
    %24 = vector.shape_cast %23 : vector<16x1xf32> to vector<1x16x1xf32>
    %cst_14 = arith.constant dense<0xFF800000> : vector<1xf32>
    %25 = vector.multi_reduction <maximumf>, %24, %cst_14 [1, 2] : vector<1x16x1xf32> to vector<1xf32>
    %26 = vector.shape_cast %25 : vector<1xf32> to vector<1x1x1xf32>
    %27 = vector.extract %26[0, 0, 0] : f32 from vector<1x1x1xf32>
    %cst_15 = arith.constant 0.000000e+00 : f32
    %28 = arith.cmpf ogt, %27, %cst_15 : f32
    %29 = arith.extui %28 : i1 to i32
    %c0_i32 = arith.constant 0 : i32
    %30 = arith.cmpi ne, %29, %c0_i32 : i32
    scf.if %30 {
      %34 = tpu.iota {dimensions = array<i32: 1>} : vector<16x256xi32>
      %35 = vector.broadcast %14 : i32 to vector<16x256xi32>
      %36 = arith.addi %35, %34 : vector<16x256xi32>
      %37 = vector.broadcast %13 : vector<16x1xi32> to vector<16x256xi32>
      %38 = arith.cmpi eq, %36, %37 : vector<16x256xi32>
      %cst_17 = arith.constant -0.87758255 : f32
      %39 = vector.broadcast %cst_17 : f32 to vector<16x256xf32>
      %40 = arith.cmpf oge, %12, %39 : vector<16x256xf32>
      %41 = arith.andi %38, %40 : vector<16x256xi1>
      %42 = arith.mulf %12, %12 : vector<16x256xf32>
      %cst_18 = arith.constant 1.000000e+00 : f32
      %43 = vector.broadcast %cst_18 : f32 to vector<16x256xf32>
      %44 = arith.subf %43, %42 : vector<16x256xf32>
      %cst_19 = arith.constant 0.000000e+00 : f32
      %45 = vector.broadcast %cst_19 : f32 to vector<16x256xf32>
      %46 = arith.maximumf %44, %45 : vector<16x256xf32>
      %47 = math.sqrt %46 : vector<16x256xf32>
      %cst_20 = arith.constant 0.87758255 : f32
      %48 = vector.broadcast %cst_20 : f32 to vector<16x256xf32>
      %49 = arith.mulf %12, %48 : vector<16x256xf32>
      %cst_21 = arith.constant 0.47942555 : f32
      %50 = vector.broadcast %cst_21 : f32 to vector<16x256xf32>
      %51 = arith.mulf %47, %50 : vector<16x256xf32>
      %52 = arith.subf %49, %51 : vector<16x256xf32>
      %53 = arith.select %41, %52, %12 : vector<16x256xi1>, vector<16x256xf32>
      %cst_22 = arith.constant 6.400000e+01 : f32
      %54 = vector.broadcast %cst_22 : f32 to vector<16x256xf32>
      %55 = arith.mulf %53, %54 : vector<16x256xf32>
      %c0_23 = arith.constant 0 : index
      %c0_24 = arith.constant 0 : index
      %56 = vector.load %arg7[%c0_23, %c0_24] : memref<16x256xf32, #tpu.memory_space<vmem>>, vector<16x256xf32>
      tpu.vector_store %arg7[%c0_23, %c0_24], %55 {strides = array<i32>} : memref<16x256xf32, #tpu.memory_space<vmem>>, vector<16x256xf32>,
    } else {
    }
    %true = arith.constant true
    %31 = arith.xori %28, %true : i1
    %32 = arith.extui %31 : i1 to i32
    %c0_i32_16 = arith.constant 0 : i32
    %33 = arith.cmpi ne, %32, %c0_i32_16 : i32
    scf.if %33 {
      %cst_17 = arith.constant 6.400000e+01 : f32
      %34 = vector.broadcast %cst_17 : f32 to vector<16x256xf32>
      %35 = arith.mulf %12, %34 : vector<16x256xf32>
      %c0_18 = arith.constant 0 : index
      %c0_19 = arith.constant 0 : index
      %36 = vector.load %arg7[%c0_18, %c0_19] : memref<16x256xf32, #tpu.memory_space<vmem>>, vector<16x256xf32>
      tpu.vector_store %arg7[%c0_18, %c0_19], %35 {strides = array<i32>} : memref<16x256xf32, #tpu.memory_space<vmem>>, vector<16x256xf32>,
    } else {
    }
    return
  }
  func.func @transform_0(%arg0: i32, %arg1: i32) -> (i32, i32) {
    %c0_i32 = arith.constant 0 : i32
    %c0_i32_0 = arith.constant 0 : i32
    return %arg1, %c0_i32 : i32, i32
  }
  func.func @transform_1(%arg0: i32, %arg1: i32) -> (i32, i32) {
    %c0_i32 = arith.constant 0 : i32
    %c0_i32_0 = arith.constant 0 : i32
    return %c0_i32, %arg0 : i32, i32
  }
  func.func @transform_2(%arg0: i32, %arg1: i32) -> (i32, i32) {
    %c0_i32 = arith.constant 0 : i32
    %c0_i32_0 = arith.constant 0 : i32
    return %arg1, %c0_i32 : i32, i32
  }
  func.func @transform_3(%arg0: i32, %arg1: i32) -> (i32, i32) {
    %c0_i32 = arith.constant 0 : i32
    %c0_i32_0 = arith.constant 0 : i32
    return %c0_i32, %arg0 : i32, i32
  }
  func.func @transform_4(%arg0: i32, %arg1: i32) -> (i32, i32) {
    %c0_i32 = arith.constant 0 : i32
    %c0_i32_0 = arith.constant 0 : i32
    return %arg1, %c0_i32 : i32, i32
  }
  func.func @transform_5(%arg0: i32, %arg1: i32) -> (i32, i32) {
    %c0_i32 = arith.constant 0 : i32
    return %arg1, %arg0 : i32, i32
  }
}

</mosaic_0001>

<llo_original>
// kernel: tpu_custom_call.1
$region0: #{tpu_custom_call.1}
  #allocation0 [shape = 'u32[]', space=smem, size = 0x4, offset = 0x4, fixed_abs, tag = 'smem constant byte address 0x4 - core index']
  #allocation1 [shape = 'u32[72,128]{1,0:T(1,128)}', space=vmem, size = 0x9000, scoped, tag = 'internal scratch']
  %s0 = inlined_call_operand.vmem [shape: bf16[16,128], index: 0, kind: input, shape index: {}]
  %s1 = inlined_call_operand.hbm [shape: bf16[128,256], index: 1, kind: input, shape index: {}]
  %s2 = inlined_call_operand.vmem [shape: f32[16,1], index: 2, kind: input, shape index: {}]
  %s3 = inlined_call_operand.vmem [shape: f32[1,256], index: 3, kind: input, shape index: {}]
  %s4 = inlined_call_operand.vmem [shape: s32[16,1], index: 4, kind: input, shape index: {}]
  %s5 = inlined_call_operand.hbm [shape: f32[16,256], index: 5, kind: output, shape index: {}]
  %s6 = sld [smem:[#allocation0]]
  $region42: #{tpu_custom_call.1} parent=0
    _
  %s8 = ssub.s32 1, %s6
  %s9 = scalar_select 0, %s8, %s6
  $region1: #{tpu_custom_call.1} parent=0
    #allocation2 [shape = 'u8[65536]{0}', space=vmem, size = 0x10000, scoped, tag = 'input window, operand 1, single buffered']
    #allocation3 [shape = 's32[1]{0}', space=sflag, size = 0x4, scoped, tag = 'scoped memory for tpu_custom_call.1']
    #allocation4 [shape = 's32[1]{0}', space=sflag, size = 0x4, scoped, tag = 'scoped memory for tpu_custom_call.1']
    #allocation5 [shape = 'u8[16384]{0}', space=vmem, size = 0x4000, scoped, tag = 'output window, operand 0, single buffered']
    %10 = vsyncpa [#allocation3], 0
    %11 = vsyncpa [#allocation4], 0
    // Predicated region
    $region2: #{tpu_custom_call.1} parent=1 // pred_check
      _
    $region3: #{tpu_custom_call.1} parent=1 // pred_check_branch
      %13 = sbr.rel (0) target = $region5
    $region4: #{tpu_custom_call.1} parent=1 // pred_region
      _
    $region5: #{tpu_custom_call.1} parent=1 // pred_fallthru
      _
    // Predicated region
    $region6: #{tpu_custom_call.1} parent=1 // pred_check
      _
    $region7: #{tpu_custom_call.1} parent=1 // pred_check_branch
      %15 = sbr.rel (0) target = $region9
    $region8: #{tpu_custom_call.1} parent=1 // pred_region
      %17 = vsyncadd [#allocation3], 0
      %s18 = sshll.u32 %s1, 4
      %s19 = int_to_ptr.hbm [resolvable:$true] %s18
      %s20 = sshll.u32 [#allocation2], 4
      %s21 = int_to_ptr.vmem [resolvable:$true] %s20
      %26 = dma.hbm_to_vmem [thread:$0]  %s19, 2048, %s21, [#allocation3], 128, 128, 8
    $region9: #{tpu_custom_call.1} parent=1 // pred_fallthru
      _
    // Predicated region
    $region10: #{tpu_custom_call.1} parent=1 // pred_check
      _
    $region11: #{tpu_custom_call.1} parent=1 // pred_check_branch
      %28 = sbr.rel (0) target = $region13
    $region12: #{tpu_custom_call.1} parent=1 // pred_region
      _
    $region13: #{tpu_custom_call.1} parent=1 // pred_fallthru
      _
    // Predicated region
    $region14: #{tpu_custom_call.1} parent=1 // pred_check
      _
    $region15: #{tpu_custom_call.1} parent=1 // pred_check_branch
      %30 = sbr.rel (0) target = $region17
    $region16: #{tpu_custom_call.1} parent=1 // pred_region
      _
    $region17: #{tpu_custom_call.1} parent=1 // pred_fallthru
      _
    // Predicated region
    $region18: #{tpu_custom_call.1} parent=1 // pred_check
      _
    $region19: #{tpu_custom_call.1} parent=1 // pred_check_branch
      %32 = sbr.rel (0) target = $region21
    $region20: #{tpu_custom_call.1} parent=1 // pred_region
      _
    $region21: #{tpu_custom_call.1} parent=1 // pred_fallthru
      _
    // Predicated region
    $region22: #{tpu_custom_call.1} parent=1 // pred_check
      _
    $region23: #{tpu_custom_call.1} parent=1 // pred_check_branch
      %34 = sbr.rel (0) target = $region25
    $region24: #{tpu_custom_call.1} parent=1 // pred_region
      %36 = dma.done [#allocation3], 2048
    $region25: #{tpu_custom_call.1} parent=1 // pred_fallthru
      _
    %v37 = vld [vmem:[%s0] sm:$0xf]
    %v38 = vld [vmem:[%s0 + $0x4] sm:$0xf]
    %v39 = vld [vmem:[#allocation2] sm:$0xff]
    %v40 = vld [vmem:[#allocation2 + $0x8] sm:$0xff]
    %v41 = vld [vmem:[#allocation2 + $0x10] sm:$0xff]
    %v42 = vld [vmem:[#allocation2 + $0x18] sm:$0xff]
    %v43 = vld [vmem:[#allocation2 + $0x20] sm:$0xff]
    %v44 = vld [vmem:[#allocation2 + $0x28] sm:$0xff]
    %v45 = vld [vmem:[#allocation2 + $0x30] sm:$0xff]
    %v46 = vld [vmem:[#allocation2 + $0x38] sm:$0xff]
    %v47 = vld [vmem:[#allocation2 + $0x40] sm:$0xff]
    %v48 = vld [vmem:[#allocation2 + $0x48] sm:$0xff]
    %v49 = vld [vmem:[#allocation2 + $0x50] sm:$0xff]
    %v50 = vld [vmem:[#allocation2 + $0x58] sm:$0xff]
    %v51 = vld [vmem:[#allocation2 + $0x60] sm:$0xff]
    %v52 = vld [vmem:[#allocation2 + $0x68] sm:$0xff]
    %v53 = vld [vmem:[#allocation2 + $0x70] sm:$0xff]
    %v54 = vld [vmem:[#allocation2 + $0x78] sm:$0xff]
    %v57 = vunpack.c.l.b16 %v37
    %v58 = vunpack.c.l.b16 %v38
    %v59 = vpack.c.b16 %v58, %v57
    %v77 = vunpack.c.l.b16 %v39
    %v78 = vunpack.c.h.b16 %v39
    %v79 = vunpack.c.l.b16 %v40
    %v80 = vunpack.c.h.b16 %v40
    %v81 = vunpack.c.l.b16 %v41
    %v82 = vunpack.c.h.b16 %v41
    %v83 = vunpack.c.l.b16 %v42
    %v84 = vunpack.c.h.b16 %v42
    %v85 = vunpack.c.l.b16 %v43
    %v86 = vunpack.c.h.b16 %v43
    %v87 = vunpack.c.l.b16 %v44
    %v88 = vunpack.c.h.b16 %v44
    %v89 = vunpack.c.l.b16 %v45
    %v90 = vunpack.c.h.b16 %v45
    %v91 = vunpack.c.l.b16 %v46
    %v92 = vunpack.c.h.b16 %v46
    %v93 = vunpack.c.l.b16 %v47
    %v94 = vunpack.c.h.b16 %v47
    %v95 = vunpack.c.l.b16 %v48
    %v96 = vunpack.c.h.b16 %v48
    %v97 = vunpack.c.l.b16 %v49
    %v98 = vunpack.c.h.b16 %v49
    %v99 = vunpack.c.l.b16 %v50
    %v100 = vunpack.c.h.b16 %v50
    %v101 = vunpack.c.l.b16 %v51
    %v102 = vunpack.c.h.b16 %v51
    %v103 = vunpack.c.l.b16 %v52
    %v104 = vunpack.c.h.b16 %v52
    %v105 = vunpack.c.l.b16 %v53
    %v106 = vunpack.c.h.b16 %v53
    %v107 = vunpack.c.l.b16 %v54
    %v108 = vunpack.c.h.b16 %v54
    %v109 = vpack.c.b16 %v79, %v77
    %v110 = vpack.c.b16 %v80, %v78
    %v111 = vpack.c.b16 %v83, %v81
    %v112 = vpack.c.b16 %v84, %v82
    %v113 = vpack.c.b16 %v87, %v85
    %v114 = vpack.c.b16 %v88, %v86
    %v115 = vpack.c.b16 %v91, %v89
    %v116 = vpack.c.b16 %v92, %v90
    %v117 = vpack.c.b16 %v95, %v93
    %v118 = vpack.c.b16 %v96, %v94
    %v119 = vpack.c.b16 %v99, %v97
    %v120 = vpack.c.b16 %v100, %v98
    %v121 = vpack.c.b16 %v103, %v101
    %v122 = vpack.c.b16 %v104, %v102
    %v123 = vpack.c.b16 %v107, %v105
    %v124 = vpack.c.b16 %v108, %v106
    %141 = vmatpush.bf16.msra.mxu0 %v123
    %142 = vmatpush.bf16.msra.mxu0 %v121
    %143 = vmatpush.bf16.msra.mxu0 %v119
    %144 = vmatpush.bf16.msra.mxu0 %v117
    %145 = vmatpush.bf16.msra.mxu0 %v115
    %146 = vmatpush.bf16.msra.mxu0 %v113
    %147 = vmatpush.bf16.msra.mxu0 %v111
    %148 = vmatpush.bf16.msra.mxu0 %v109
    %149 = vmatmul.bf16.gmra.mxu0 %v59
    %v150 = vpop.f32.mrf.mxu0
    %v151 = vadd.f32 0.0, %v150
    %v152 = vpop.f32.mrf.mxu0
    %v153 = vadd.f32 0.0, %v152
    %154 = vdwg.mxu0
    %155 = vmatpush.bf16.msra.mxu0 %v124
    %156 = vmatpush.bf16.msra.mxu0 %v122
    %157 = vmatpush.bf16.msra.mxu0 %v120
    %158 = vmatpush.bf16.msra.mxu0 %v118
    %159 = vmatpush.bf16.msra.mxu0 %v116
    %160 = vmatpush.bf16.msra.mxu0 %v114
    %161 = vmatpush.bf16.msra.mxu0 %v112
    %162 = vmatpush.bf16.msra.mxu0 %v110
    %163 = vmatmul.bf16.gmra.mxu0 %v59
    %v164 = vpop.f32.mrf.mxu0
    %v165 = vadd.f32 0.0, %v164
    %v166 = vpop.f32.mrf.mxu0
    %v167 = vadd.f32 0.0, %v166
    %168 = vdwg.mxu0
    %v169 = vld [vmem:[%s2] sm:$0xff]
    %v170 = vld [vmem:[%s2 + $0x8] sm:$0xff]
    %172 = vset.pattern.permute.xlu0 0
    %173 = vperm.xlu0 %172, %v169
    %v174 = vpop.permute.xlu0 %173
    %177 = vset.pattern.permute.xlu0 0
    %178 = vperm.xlu0 %177, %v170
    %v179 = vpop.permute.xlu0 %178
    %v181 = vmul.f32 %v151, %v174
    %v182 = vmul.f32 %v165, %v174
    %v183 = vmul.f32 %v153, %v179
    %v184 = vmul.f32 %v167, %v179
    %v185 = vld [vmem:[%s3] sm:$0x3]
    %v187 = vperm.slane %v185, 0
    %v188 = vperm.slane %v185, 1
    %v191 = vmul.f32 %v181, %v187
    %v192 = vmul.f32 %v182, %v188
    %v193 = vmul.f32 %v183, %v187
    %v194 = vmul.f32 %v184, %v188
    %v195 = vmax.f32 %v191, -0.999999
    %v196 = vmax.f32 %v192, -0.999999
    %v197 = vmax.f32 %v193, -0.999999
    %v198 = vmax.f32 %v194, -0.999999
    %v199 = vmin.f32 %v195, 0.999999
    %v200 = vmin.f32 %v196, 0.999999
    %v201 = vmin.f32 %v197, 0.999999
    %v202 = vmin.f32 %v198, 0.999999
    %v203 = vld [vmem:[%s4] sm:$0xff]
    %v204 = vld [vmem:[%s4 + $0x8] sm:$0xff]
    %s205 = smul.u32 0, 256
    %v206 = vstv %s205
    %vm207 = vcmp.ge.s32.totalorder %v203, %v206
    %vm208 = vcmp.ge.s32.totalorder %v204, %v206
    %s209 = sadd.s32 %s205, 256
    %v210 = vstv %s209
    %vm211 = vcmp.lt.s32.totalorder %v203, %v210
    %vm212 = vcmp.lt.s32.totalorder %v204, %v210
    %vm213 = vmand %vm207, %vm211
    %vm214 = vmand %vm208, %vm212
    %v215 = vsel %vm213, 1.0, 0.0
    %v216 = vsel %vm214, 1.0, 0.0
    %vm217 = vcmask 7168
    %v218 = vsel %vm217, %v215, -inf
    %v219 = vsel %vm217, %v216, -inf
    %v220 = vmax.f32 %v218, %v219
    %221 = vmax.xlane.f32.xlu0 %v220
    %v222 = vpop.xlane.xlu0 %221
    %v223 = vrot.slane %v222, 4
    %v224 = vmax.f32 %v222, %v223
    %v225 = vrot.slane %v224, 2
    %v226 = vmax.f32 %v224, %v225
    %v227 = vrot.slane %v226, 1
    %v228 = vmax.f32 %v226, %v227
    %s229 = vtos %v228
    %p230 = scmp.gt.f32.partialorder %s229, 0.0
    // Predicated region
    $region26: #{tpu_custom_call.1} parent=1 // pred_check
      %p231 = pneg %p230
    $region27: #{tpu_custom_call.1} parent=1 // pred_check_branch
      %233 = sbr.rel (%p231) target = $region29
    $region28: #{tpu_custom_call.1} parent=1 // pred_region
      %v234 = vlaneseq
      %v235 = vand.u32 %v234, 127
      %v236 = vadd.s32 %v235, 128
      %v237 = vadd.s32 %v206, %v235
      %v238 = vadd.s32 %v206, %v236
      %239 = vset.pattern.permute.xlu0 0
      %240 = vperm.xlu0 %239, %v203
      %v241 = vpop.permute.xlu0 %240
      %242 = vset.pattern.permute.xlu0 0
      %243 = vperm.xlu0 %242, %v204
      %v244 = vpop.permute.xlu0 %243
      %vm245 = vcmp.eq.s32.totalorder %v237, %v241
      %vm246 = vcmp.eq.s32.totalorder %v238, %v241
      %vm247 = vcmp.eq.s32.totalorder %v237, %v244
      %vm248 = vcmp.eq.s32.totalorder %v238, %v244
      %vm249 = vcmp.ge.f32.partialorder %v199, -0.87758255
      %vm250 = vcmp.ge.f32.partialorder %v200, -0.87758255
      %vm251 = vcmp.ge.f32.partialorder %v201, -0.87758255
      %vm252 = vcmp.ge.f32.partialorder %v202, -0.87758255
      %vm253 = vmand %vm245, %vm249
      %vm254 = vmand %vm246, %vm250
      %vm255 = vmand %vm247, %vm251
      %vm256 = vmand %vm248, %vm252
      %v257 = vmul.f32 %v199, %v199
      %v258 = vmul.f32 %v200, %v200
      %v259 = vmul.f32 %v201, %v201
      %v260 = vmul.f32 %v202, %v202
      %v261 = vsub.f32 1.0, %v257
      %v262 = vsub.f32 1.0, %v258
      %v263 = vsub.f32 1.0, %v259
      %v264 = vsub.f32 1.0, %v260
      %v265 = vmax.f32 %v261, 0.0
      %v266 = vmax.f32 %v262, 0.0
      %v267 = vmax.f32 %v263, 0.0
      %v268 = vmax.f32 %v264, 0.0
      %v269 = vrsqrt.pop %v265
      %v270 = vmul.f32 %v269, %v265
      %v271 = vmul.f32 %v270, %v269
      %v272 = vmul.f32 0.5, %v271
      %v273 = vsub.f32 1.5, %v272
      %v274 = vmul.f32 %v269, %v273
      %v275 = vmul.f32 %v265, %v274
      %vm276 = vcmp.eq.f32.partialorder %v265, inf
      %v277 = vsel %vm276, %v265, %v275
      %vm278 = vcmp.eq.f32.partialorder %v265, 0.0
      %v279 = vand.u32 %v265, 2147483648
      %v280 = vsel %vm278, %v279, %v277
      %v281 = vrsqrt.pop %v266
      %v282 = vmul.f32 %v281, %v266
      %v283 = vmul.f32 %v282, %v281
      %v284 = vmul.f32 0.5, %v283
      %v285 = vsub.f32 1.5, %v284
      %v286 = vmul.f32 %v281, %v285
      %v287 = vmul.f32 %v266, %v286
      %vm288 = vcmp.eq.f32.partialorder %v266, inf
      %v289 = vsel %vm288, %v266, %v287
      %vm290 = vcmp.eq.f32.partialorder %v266, 0.0
      %v291 = vand.u32 %v266, 2147483648
      %v292 = vsel %vm290, %v291, %v289
      %v293 = vrsqrt.pop %v267
      %v294 = vmul.f32 %v293, %v267
      %v295 = vmul.f32 %v294, %v293
      %v296 = vmul.f32 0.5, %v295
      %v297 = vsub.f32 1.5, %v296
      %v298 = vmul.f32 %v293, %v297
      %v299 = vmul.f32 %v267, %v298
      %vm300 = vcmp.eq.f32.partialorder %v267, inf
      %v301 = vsel %vm300, %v267, %v299
      %vm302 = vcmp.eq.f32.partialorder %v267, 0.0
      %v303 = vand.u32 %v267, 2147483648
      %v304 = vsel %vm302, %v303, %v301
      %v305 = vrsqrt.pop %v268
      %v306 = vmul.f32 %v305, %v268
      %v307 = vmul.f32 %v306, %v305
      %v308 = vmul.f32 0.5, %v307
      %v309 = vsub.f32 1.5, %v308
      %v310 = vmul.f32 %v305, %v309
      %v311 = vmul.f32 %v268, %v310
      %vm312 = vcmp.eq.f32.partialorder %v268, inf
      %v313 = vsel %vm312, %v268, %v311
      %vm314 = vcmp.eq.f32.partialorder %v268, 0.0
      %v315 = vand.u32 %v268, 2147483648
      %v316 = vsel %vm314, %v315, %v313
      %v317 = vmul.f32 %v199, 0.87758255
      %v318 = vmul.f32 %v200, 0.87758255
      %v319 = vmul.f32 %v201, 0.87758255
      %v320 = vmul.f32 %v202, 0.87758255
      %v321 = vmul.f32 %v280, 0.47942555
      %v322 = vmul.f32 %v292, 0.47942555
      %v323 = vmul.f32 %v304, 0.47942555
      %v324 = vmul.f32 %v316, 0.47942555
      %v325 = vsub.f32 %v317, %v321
      %v326 = vsub.f32 %v318, %v322
      %v327 = vsub.f32 %v319, %v323
      %v328 = vsub.f32 %v320, %v324
      %v329 = vsel %vm253, %v325, %v199
      %v330 = vsel %vm254, %v326, %v200
      %v331 = vsel %vm255, %v327, %v201
      %v332 = vsel %vm256, %v328, %v202
      %v333 = vmul.f32 %v329, 64.0
      %v334 = vmul.f32 %v330, 64.0
      %v335 = vmul.f32 %v331, 64.0
      %v336 = vmul.f32 %v332, 64.0
      %337 = vst [vmem:[#allocation5] sm:$0xff] %v333
      %338 = vst [vmem:[#allocation5 + $0x8] sm:$0xff] %v334
      %339 = vst [vmem:[#allocation5 + $0x10] sm:$0xff] %v335
      %340 = vst [vmem:[#allocation5 + $0x18] sm:$0xff] %v336
    $region29: #{tpu_custom_call.1} parent=1 // pred_fallthru
      _
    %p341 = pneg %p230
    // Predicated region
    $region30: #{tpu_custom_call.1} parent=1 // pred_check
      _
    $region31: #{tpu_custom_call.1} parent=1 // pred_check_branch
      %343 = sbr.rel (%p230) target = $region33
    $region32: #{tpu_custom_call.1} parent=1 // pred_region
      %v344 = vmul.f32 %v199, 64.0
      %v345 = vmul.f32 %v200, 64.0
      %v346 = vmul.f32 %v201, 64.0
      %v347 = vmul.f32 %v202, 64.0
      %348 = vst [vmem:[#allocation5] sm:$0xff] %v344
      %349 = vst [vmem:[#allocation5 + $0x8] sm:$0xff] %v345
      %350 = vst [vmem:[#allocation5 + $0x10] sm:$0xff] %v346
      %351 = vst [vmem:[#allocation5 + $0x18] sm:$0xff] %v347
    $region33: #{tpu_custom_call.1} parent=1 // pred_fallthru
      _
    // Predicated region
    $region34: #{tpu_custom_call.1} parent=1 // pred_check
      _
    $region35: #{tpu_custom_call.1} parent=1 // pred_check_branch
      %353 = sbr.rel (0) target = $region37
    $region36: #{tpu_custom_call.1} parent=1 // pred_region
      %355 = vsyncadd [#allocation4], 0
      %s356 = sshll.u32 [#allocation5], 4
      %s357 = int_to_ptr.vmem [resolvable:$true] %s356
      %s358 = sshll.u32 %s5, 4
      %s359 = int_to_ptr.hbm [resolvable:$true] %s358
      %364 = dma.vmem_to_hbm [thread:$0]  %s357, 512, %s359, [#allocation4], 256, 256, 16
    $region37: #{tpu_custom_call.1} parent=1 // pred_fallthru
      _
    // Predicated region
    $region38: #{tpu_custom_call.1} parent=1 // pred_check
      _
    $region39: #{tpu_custom_call.1} parent=1 // pred_check_branch
      %366 = sbr.rel (0) target = $region41
    $region40: #{tpu_custom_call.1} parent=1 // pred_region
      %368 = dma.done [#allocation4], 512
    $region41: #{tpu_custom_call.1} parent=1 // pred_fallthru
      _
    %369 = vsyncpa [#allocation3], 1
    %370 = vsyncpa [#allocation4], 1

</llo_original>
